<compile_context>
chip_gen: v7x
topology: tpu7x:2x2x1
jax: 0.10.0
libtpu: 0.0.40
codegen_flags: <defaults>
</compile_context>

<pallas_src>
import functools

import jax
import jax.numpy as jnp
from jax.experimental import pallas as pl
from jax.experimental.pallas import tpu as pltpu

# x (B, TK) @ W_t (TK, TN) -> (B, TN): contract dim 1 of lhs with dim 0 of rhs.
_CONTRACT = (((1,), (0,)), ((), ()))


# -----------------------------------------------------------------------------
# Kernels
# -----------------------------------------------------------------------------
def _noisy_linear_train_kernel(x_ref, wmu_ref, wsig_ref, ein_ref, eout_ref,
                               bmu_ref, bsig_ref, o_ref, *, precision):
    k = pl.program_id(1)

    @pl.when(k == 0)
    def _():
        o_ref[...] = jnp.zeros_like(o_ref)

    x = x_ref[...]                                   # (B, TK)
    y_mu = jax.lax.dot_general(                      # x @ Wmu_t tile
        x, wmu_ref[...], _CONTRACT,
        precision=precision, preferred_element_type=jnp.float32)
    xs = x * ein_ref[...]                            # O(B*TK) VPU scale
    y_sig = jax.lax.dot_general(                     # (x*eps_in) @ Wsig_t tile
        xs, wsig_ref[...], _CONTRACT,
        precision=precision, preferred_element_type=jnp.float32)
    # eps_out is constant across the K reduction, so the rank-1 noise term can
    # be folded in per step with a single (1, TN)-broadcast multiply.
    o_ref[...] += y_mu + eout_ref[...] * y_sig

    @pl.when(k == pl.num_programs(1) - 1)
    def _():
        # bias = bias_mu + bias_sigma * bias_epsilon, with bias_epsilon = eps_out
        o_ref[...] += bmu_ref[...] + bsig_ref[...] * eout_ref[...]


def _noisy_linear_eval_kernel(x_ref, wmu_ref, bmu_ref, o_ref, *, precision):
    k = pl.program_id(1)

    @pl.when(k == 0)
    def _():
        o_ref[...] = jnp.zeros_like(o_ref)

    o_ref[...] += jax.lax.dot_general(
        x_ref[...], wmu_ref[...], _CONTRACT,
        precision=precision, preferred_element_type=jnp.float32)

    @pl.when(k == pl.num_programs(1) - 1)
    def _():
        o_ref[...] += bmu_ref[...]


# -----------------------------------------------------------------------------
# Wrapper
# -----------------------------------------------------------------------------
def _pick_tile(dim, target, align=128):
    """Largest divisor of `dim` that is <= target and a multiple of `align`;
    falls back to the full dim (a full-extent block is always legal)."""
    if dim % align != 0:
        return dim
    t = min(target, dim)
    t -= t % align
    while t >= align:
        if dim % t == 0:
            return t
        t -= align
    return dim


def noisy_linear(x, params, *, training=True, tn=None, tk=None,
                 precision=jax.lax.Precision.DEFAULT):
    """Forward pass of NoisyLinear.

    x: (B, in_features) float32
    params: dict with weight_mu_t / weight_sigma_t  (in_features, out_features)
            (pre-transposed once at init), bias_mu / bias_sigma (out_features,),
            eps_in (in_features,), eps_out (out_features,)
            [weight_epsilon = outer(eps_out, eps_in); bias_epsilon = eps_out].
    """
    B, in_features = x.shape
    in_f2, out_features = params["weight_mu_t"].shape
    assert in_f2 == in_features
    # Direct accumulation into the resident output block requires f32 output.
    assert x.dtype == jnp.float32, "pass f32 activations"
    # TODO(synk): for large B, add an M (batch) grid axis so x is not
    # re-streamed once per N tile and v7x gets a second sharding dimension.

    if tn is None:
        tn_target = 512
        if out_features % 128 == 0 and out_features >= 256:
            # >= 2 N tiles so the "parallel" axis feeds both v7x TensorCores.
            tn_target = min(tn_target, out_features // 2)
        tn = _pick_tile(out_features, tn_target)
    if tk is None:
        tk = _pick_tile(in_features, 2048)
    assert out_features % tn == 0 and in_features % tk == 0
    grid = (out_features // tn, in_features // tk)   # K (reduction) innermost

    out_shape = jax.ShapeDtypeStruct((B, out_features), x.dtype)
    compiler_params = pltpu.CompilerParams(
        dimension_semantics=("parallel", "arbitrary"),   # N parallel, K reduction
        vmem_limit_bytes=48 * 1024 * 1024)               # fits v7x 64 MiB VMEM

    x_spec = pl.BlockSpec((B, tk), lambda j, k: (0, k))
    w_spec = pl.BlockSpec((tk, tn), lambda j, k: (k, j))    # N on lanes
    n_row_spec = pl.BlockSpec((1, tn), lambda j, k: (0, j))
    k_row_spec = pl.BlockSpec((1, tk), lambda j, k: (0, k))
    out_spec = pl.BlockSpec((B, tn), lambda j, k: (0, j))   # lane-dense output

    bias_mu = params["bias_mu"].reshape(1, out_features)

    if not training:
        return pl.pallas_call(
            functools.partial(_noisy_linear_eval_kernel, precision=precision),
            out_shape=out_shape,
            grid=grid,
            in_specs=[x_spec, w_spec, n_row_spec],
            out_specs=out_spec,
            compiler_params=compiler_params,
        )(x, params["weight_mu_t"], bias_mu)

    eps_in = params["eps_in"].reshape(1, in_features)
    eps_out = params["eps_out"].reshape(1, out_features)    # also bias_epsilon
    bias_sigma = params["bias_sigma"].reshape(1, out_features)

    return pl.pallas_call(
        functools.partial(_noisy_linear_train_kernel, precision=precision),
        out_shape=out_shape,
        grid=grid,
        in_specs=[x_spec, w_spec, w_spec, k_row_spec, n_row_spec,
                  n_row_spec, n_row_spec],
        out_specs=out_spec,
        compiler_params=compiler_params,
    )(x, params["weight_mu_t"], params["weight_sigma_t"], eps_in, eps_out,
      bias_mu, bias_sigma)


# -----------------------------------------------------------------------------
# Init (mirrors reset_parameters / reset_noise of the PyTorch module)
# -----------------------------------------------------------------------------
def init_noisy_linear(key, in_features, out_features, std_init=0.5):
    k_wmu, k_bmu, k_ein, k_eout = jax.random.split(key, 4)
    mu_range = 1.0 / (float(in_features) ** 0.5)

    # Weights stored pre-transposed (in, out): one-time, free, guarantees the
    # kernel's RHS tile is (TK, TN) with N on lanes (no in-kernel transpose).
    weight_mu_t = jax.random.uniform(
        k_wmu, (in_features, out_features), jnp.float32, -mu_range, mu_range)
    weight_sigma_t = jnp.full((in_features, out_features),
                              std_init / (float(in_features) ** 0.5), jnp.float32)
    bias_mu = jax.random.uniform(
        k_bmu, (out_features,), jnp.float32, -mu_range, mu_range)
    bias_sigma = jnp.full((out_features,),
                          std_init / (float(out_features) ** 0.5), jnp.float32)

    # reset_noise(): this module uses raw Gaussian factors (torch.randn) and an
    # outer product; we keep only the factors — the kernel applies the rank-1
    # identity instead of ever forming the (out, in) epsilon matrix.
    eps_in = jax.random.normal(k_ein, (in_features,), jnp.float32)
    eps_out = jax.random.normal(k_eout, (out_features,), jnp.float32)

    return dict(weight_mu_t=weight_mu_t, weight_sigma_t=weight_sigma_t,
                bias_mu=bias_mu, bias_sigma=bias_sigma,
                eps_in=eps_in, eps_out=eps_out)


# -----------------------------------------------------------------------------
# Reference + demo
# -----------------------------------------------------------------------------
def _reference(x, p, training=True):
    if training:
        w_t = p["weight_mu_t"] + p["weight_sigma_t"] * jnp.outer(p["eps_in"],
                                                                 p["eps_out"])
        b = p["bias_mu"] + p["bias_sigma"] * p["eps_out"]
    else:
        w_t, b = p["weight_mu_t"], p["bias_mu"]
    return jnp.dot(x, w_t, precision=jax.lax.Precision.HIGHEST) + b


def _check(name, got, want, atol, rtol):
    assert got.shape == want.shape, f"{name}: shape {got.shape} vs {want.shape}"
    assert jnp.allclose(got, want, atol=atol, rtol=rtol), (
        f"{name} mismatch: max abs err {float(jnp.max(jnp.abs(got - want)))}")


if __name__ == "__main__":
    key = jax.random.PRNGKey(0)
    k_p1, k_x1, k_p2, k_x2 = jax.random.split(key, 4)

    # Lane-dense shapes: B multiple of 8, in/out multiples of 128.
    B, IN, OUT = 8, 512, 256
    params = init_noisy_linear(k_p1, IN, OUT, std_init=0.5)
    x = jax.random.normal(k_x1, (B, IN), jnp.float32)
    ref_train = _reference(x, params, training=True)
    ref_eval = _reference(x, params, training=False)

    # Default tiles (tn capped at OUT//2 -> grid (2, 1)) + DEFAULT precision
    # (bf16 MXU passes -> loose tolerance).
    y_train = jax.block_until_ready(noisy_linear(x, params, training=True))
    _check("train", y_train, ref_train, atol=3e-2, rtol=3e-2)

    y_eval = jax.block_until_ready(noisy_linear(x, params, training=False))
    _check("eval", y_eval, ref_eval, atol=3e-2, rtol=3e-2)

    # Small explicit tiles force a real (2, 4) grid with K accumulation in the
    # resident output block; HIGHEST precision -> tight tolerance.
    y_hi = jax.block_until_ready(
        noisy_linear(x, params, training=True, tn=128, tk=128,
                     precision=jax.lax.Precision.HIGHEST))
    _check("train_tiled_highest", y_hi, ref_train, atol=1e-4, rtol=1e-4)

    # Non-128-aligned small layer: falls back to full-extent blocks.
    B2, IN2, OUT2 = 4, 32, 64
    params2 = init_noisy_linear(k_p2, IN2, OUT2, std_init=0.5)
    x2 = jax.random.normal(k_x2, (B2, IN2), jnp.float32)
    y2 = jax.block_until_ready(
        noisy_linear(x2, params2, training=True,
                     precision=jax.lax.Precision.HIGHEST))
    _check("train_small", y2, _reference(x2, params2, training=True),
           atol=1e-4, rtol=1e-4)

    print("KERNEL_OK")
</pallas_src>

<mosaic_0001>
module attributes {stable_mosaic.version = 11 : i64} {
  func.func @_noisy_linear_train_kernel(%arg0: i32, %arg1: i32, %arg2: memref<8x512xf32, #tpu.memory_space<vmem>>, %arg3: memref<512x128xf32, #tpu.memory_space<vmem>>, %arg4: memref<512x128xf32, #tpu.memory_space<vmem>>, %arg5: memref<1x512xf32, #tpu.memory_space<vmem>>, %arg6: memref<1x128xf32, #tpu.memory_space<vmem>>, %arg7: memref<1x128xf32, #tpu.memory_space<vmem>>, %arg8: memref<1x128xf32, #tpu.memory_space<vmem>>, %arg9: memref<8x128xf32, #tpu.memory_space<vmem>>) attributes {dimension_semantics = [#tpu.dimension_semantics<parallel>, #tpu.dimension_semantics<arbitrary>], iteration_bounds = array<i64: 2, 1>, scalar_prefetch = 0 : i64, scratch_operands = 0 : i64, tpu.core_type = #tpu.core_type<tc>, window_params = [{transform_indices = @transform_0, window_bounds = array<i64: 8, 512>}, {transform_indices = @transform_1, window_bounds = array<i64: 512, 128>}, {transform_indices = @transform_2, window_bounds = array<i64: 512, 128>}, {transform_indices = @transform_3, window_bounds = array<i64: 1, 512>}, {transform_indices = @transform_4, window_bounds = array<i64: 1, 128>}, {transform_indices = @transform_5, window_bounds = array<i64: 1, 128>}, {transform_indices = @transform_6, window_bounds = array<i64: 1, 128>}, {transform_indices = @transform_7, window_bounds = array<i64: 8, 128>}]} {
    %c0_i32 = arith.constant 0 : i32
    %0 = arith.cmpi eq, %arg1, %c0_i32 : i32
    %1 = arith.extui %0 : i1 to i32
    %c0_i32_0 = arith.constant 0 : i32
    %2 = arith.cmpi ne, %1, %c0_i32_0 : i32
    scf.if %2 {
      %cst_17 = arith.constant 0.000000e+00 : f32
      %21 = vector.broadcast %cst_17 : f32 to vector<8x128xf32>
      %c0_18 = arith.constant 0 : index
      %c0_19 = arith.constant 0 : index
      %22 = vector.load %arg9[%c0_18, %c0_19] : memref<8x128xf32, #tpu.memory_space<vmem>>, vector<8x128xf32>
      tpu.vector_store %arg9[%c0_18, %c0_19], %21 {strides = array<i32>} : memref<8x128xf32, #tpu.memory_space<vmem>>, vector<8x128xf32>,
    } else {
    }
    %c0 = arith.constant 0 : index
    %c0_1 = arith.constant 0 : index
    %3 = vector.load %arg2[%c0, %c0_1] : memref<8x512xf32, #tpu.memory_space<vmem>>, vector<8x512xf32>
    %c0_2 = arith.constant 0 : index
    %c0_3 = arith.constant 0 : index
    %4 = vector.load %arg3[%c0_2, %c0_3] : memref<512x128xf32, #tpu.memory_space<vmem>>, vector<512x128xf32>
    %cst = arith.constant dense<0.000000e+00> : vector<8x128xf32>
    %5 = tpu.matmul %3, %4, %cst {dimension_numbers = #tpu.dot_dimension_numbers<[1], [0], [0], [1], [0, 0, 1, 1], [], []>} : vector<8x512xf32>, vector<512x128xf32>, vector<8x128xf32> -> vector<8x128xf32>
    %c0_4 = arith.constant 0 : index
    %c0_5 = arith.constant 0 : index
    %6 = vector.load %arg5[%c0_4, %c0_5] : memref<1x512xf32, #tpu.memory_space<vmem>>, vector<1x512xf32>
    %7 = vector.broadcast %6 : vector<1x512xf32> to vector<8x512xf32>
    %8 = arith.mulf %3, %7 : vector<8x512xf32>
    %c0_6 = arith.constant 0 : index
    %c0_7 = arith.constant 0 : index
    %9 = vector.load %arg4[%c0_6, %c0_7] : memref<512x128xf32, #tpu.memory_space<vmem>>, vector<512x128xf32>
    %cst_8 = arith.constant dense<0.000000e+00> : vector<8x128xf32>
    %10 = tpu.matmul %8, %9, %cst_8 {dimension_numbers = #tpu.dot_dimension_numbers<[1], [0], [0], [1], [0, 0, 1, 1], [], []>} : vector<8x512xf32>, vector<512x128xf32>, vector<8x128xf32> -> vector<8x128xf32>
    %c0_9 = arith.constant 0 : index
    %c0_10 = arith.constant 0 : index
    %11 = vector.load %arg9[%c0_9, %c0_10] : memref<8x128xf32, #tpu.memory_space<vmem>>, vector<8x128xf32>
    %c0_11 = arith.constant 0 : index
    %c0_12 = arith.constant 0 : index
    %12 = vector.load %arg6[%c0_11, %c0_12] : memref<1x128xf32, #tpu.memory_space<vmem>>, vector<1x128xf32>
    %13 = vector.broadcast %12 : vector<1x128xf32> to vector<8x128xf32>
    %14 = arith.mulf %13, %10 : vector<8x128xf32>
    %15 = arith.addf %5, %14 : vector<8x128xf32>
    %16 = arith.addf %11, %15 : vector<8x128xf32>
    %c0_13 = arith.constant 0 : index
    %c0_14 = arith.constant 0 : index
    %17 = vector.load %arg9[%c0_13, %c0_14] : memref<8x128xf32, #tpu.memory_space<vmem>>, vector<8x128xf32>
    tpu.vector_store %arg9[%c0_13, %c0_14], %16 {strides = array<i32>} : memref<8x128xf32, #tpu.memory_space<vmem>>, vector<8x128xf32>,
    %c0_i32_15 = arith.constant 0 : i32
    %18 = arith.cmpi eq, %arg1, %c0_i32_15 : i32
    %19 = arith.extui %18 : i1 to i32
    %c0_i32_16 = arith.constant 0 : i32
    %20 = arith.cmpi ne, %19, %c0_i32_16 : i32
    scf.if %20 {
      %c0_17 = arith.constant 0 : index
      %c0_18 = arith.constant 0 : index
      %21 = vector.load %arg9[%c0_17, %c0_18] : memref<8x128xf32, #tpu.memory_space<vmem>>, vector<8x128xf32>
      %c0_19 = arith.constant 0 : index
      %c0_20 = arith.constant 0 : index
      %22 = vector.load %arg7[%c0_19, %c0_20] : memref<1x128xf32, #tpu.memory_space<vmem>>, vector<1x128xf32>
      %c0_21 = arith.constant 0 : index
      %c0_22 = arith.constant 0 : index
      %23 = vector.load %arg8[%c0_21, %c0_22] : memref<1x128xf32, #tpu.memory_space<vmem>>, vector<1x128xf32>
      %c0_23 = arith.constant 0 : index
      %c0_24 = arith.constant 0 : index
      %24 = vector.load %arg6[%c0_23, %c0_24] : memref<1x128xf32, #tpu.memory_space<vmem>>, vector<1x128xf32>
      %25 = arith.mulf %23, %24 : vector<1x128xf32>
      %26 = arith.addf %22, %25 : vector<1x128xf32>
      %27 = vector.broadcast %26 : vector<1x128xf32> to vector<8x128xf32>
      %28 = arith.addf %21, %27 : vector<8x128xf32>
      %c0_25 = arith.constant 0 : index
      %c0_26 = arith.constant 0 : index
      %29 = vector.load %arg9[%c0_25, %c0_26] : memref<8x128xf32, #tpu.memory_space<vmem>>, vector<8x128xf32>
      tpu.vector_store %arg9[%c0_25, %c0_26], %28 {strides = array<i32>} : memref<8x128xf32, #tpu.memory_space<vmem>>, vector<8x128xf32>,
    } else {
    }
    return
  }
  func.func @transform_0(%arg0: i32, %arg1: i32) -> (i32, i32) {
    %c0_i32 = arith.constant 0 : i32
    %c0_i32_0 = arith.constant 0 : i32
    return %c0_i32, %arg1 : i32, i32
  }
  func.func @transform_1(%arg0: i32, %arg1: i32) -> (i32, i32) {
    %c0_i32 = arith.constant 0 : i32
    return %arg1, %arg0 : i32, i32
  }
  func.func @transform_2(%arg0: i32, %arg1: i32) -> (i32, i32) {
    %c0_i32 = arith.constant 0 : i32
    return %arg1, %arg0 : i32, i32
  }
  func.func @transform_3(%arg0: i32, %arg1: i32) -> (i32, i32) {
    %c0_i32 = arith.constant 0 : i32
    %c0_i32_0 = arith.constant 0 : i32
    return %c0_i32, %arg1 : i32, i32
  }
  func.func @transform_4(%arg0: i32, %arg1: i32) -> (i32, i32) {
    %c0_i32 = arith.constant 0 : i32
    %c0_i32_0 = arith.constant 0 : i32
    return %c0_i32, %arg0 : i32, i32
  }
  func.func @transform_5(%arg0: i32, %arg1: i32) -> (i32, i32) {
    %c0_i32 = arith.constant 0 : i32
    %c0_i32_0 = arith.constant 0 : i32
    return %c0_i32, %arg0 : i32, i32
  }
  func.func @transform_6(%arg0: i32, %arg1: i32) -> (i32, i32) {
    %c0_i32 = arith.constant 0 : i32
    %c0_i32_0 = arith.constant 0 : i32
    return %c0_i32, %arg0 : i32, i32
  }
  func.func @transform_7(%arg0: i32, %arg1: i32) -> (i32, i32) {
    %c0_i32 = arith.constant 0 : i32
    %c0_i32_0 = arith.constant 0 : i32
    return %c0_i32, %arg0 : i32, i32
  }
}

</mosaic_0001>

<llo_original>
// kernel: tpu_custom_call.1
$region0: #{tpu_custom_call.1}
  #allocation0 [shape = 'u32[]', space=smem, size = 0x4, offset = 0x4, fixed_abs, tag = 'smem constant byte address 0x4 - core index']
  #allocation1 [shape = 'u32[144,128]{1,0:T(1,128)}', space=vmem, size = 0x12000, scoped, tag = 'internal scratch']
  %s0 = inlined_call_operand.hbm [shape: f32[8,512], index: 0, kind: input, shape index: {}]
  %s1 = inlined_call_operand.hbm [shape: f32[512,256], index: 1, kind: input, shape index: {}]
  %s2 = inlined_call_operand.hbm [shape: f32[512,256], index: 2, kind: input, shape index: {}]
  %s3 = inlined_call_operand.vmem [shape: f32[1,512], index: 3, kind: input, shape index: {}]
  %s4 = inlined_call_operand.vmem [shape: f32[1,256], index: 4, kind: input, shape index: {}]
  %s5 = inlined_call_operand.vmem [shape: f32[1,256], index: 5, kind: input, shape index: {}]
  %s6 = inlined_call_operand.vmem [shape: f32[1,256], index: 6, kind: input, shape index: {}]
  %s7 = inlined_call_operand.hbm [shape: f32[8,256], index: 7, kind: output, shape index: {}]
  %s8 = sld [smem:[#allocation0]]
  $region81: #{tpu_custom_call.1} parent=0
    _
  %s10 = ssub.s32 1, %s8
  %s11 = scalar_select 0, %s10, %s8
  $region1: #{tpu_custom_call.1} parent=0
    #allocation2 [shape = 'u8[16384]{0}', space=vmem, size = 0x4000, scoped, tag = 'input window, operand 0, single buffered']
    #allocation3 [shape = 's32[2]{0}', space=sflag, size = 0x8, scoped, tag = 'scoped memory for tpu_custom_call.1']
    #allocation4 [shape = 's32[2]{0}', space=sflag, size = 0x8, scoped, tag = 'scoped memory for tpu_custom_call.1']
    #allocation5 [shape = 'u8[524288]{0}', space=vmem, size = 0x80000, scoped, tag = 'input window, operand 1']
    #allocation6 [shape = 's32[2]{0}', space=sflag, size = 0x8, scoped, tag = 'scoped memory for tpu_custom_call.1']
    #allocation7 [shape = 'u8[524288]{0}', space=vmem, size = 0x80000, scoped, tag = 'input window, operand 2']
    #allocation8 [shape = 'u8[8192]{0}', space=vmem, size = 0x2000, scoped, tag = 'output window, operand 0']
    %12 = vsyncpa [#allocation3], 0
    %13 = vsyncpa [#allocation6], 0
    %s14 = scalar_lea.sflag [#allocation6], 1
    %15 = vsyncpa %s14, 0
    %16 = vsyncpa [#allocation4], 0
    %s17 = scalar_lea.sflag [#allocation4], 1
    %18 = vsyncpa %s17, 0
    loop: start=0, step=1, limit=4
    $region2: #{tpu_custom_call.1} parent=1 // loop_pre_header
      _
    $region3: #{tpu_custom_call.1} parent=1 // loop_header
      %s20 = sphi 0, %s24
      %p21 = scmp.ge.s32.totalorder %s20, 4
      %s27 = sphi 0, %s39
      %s28 = sphi 0, %s35
      %s29 = sphi 0, %s27
      %s30 = sphi 0, %s28
      %s31 = sphi 0, %s29
      %s32 = sphi 0, %s30
      %s42 = sphi 0, %s44
      %s45 = sphi 0, %s42
      %s46 = sphi 0, %s45
      %s62 = sphi 0, %s46
      %s70 = sphi 0, %s72
      %s73 = sphi 0, %s70
      %s74 = sphi 0, %s73
      %s90 = sphi 0, %s74
      %s98 = sphi 0, %s100
      %s101 = sphi 0, %s98
      %s102 = sphi 0, %s101
      %s118 = sphi 0, %s102
      %s124 = sphi 0, %s126
      %s127 = sphi 0, %s124
      %s128 = sphi 0, %s127
      %s144 = sphi 0, %s128
      %s150 = sphi 0, %s152
      %s153 = sphi 0, %s150
      %s154 = sphi 0, %s153
      %s170 = sphi 0, %s154
      %s176 = sphi 0, %s178
      %s179 = sphi 0, %s176
      %s180 = sphi 0, %s179
      %s196 = sphi 0, %s180
      %s202 = sphi 0, %s204
      %s205 = sphi 0, %s202
      %s206 = sphi 0, %s205
      %s222 = sphi 0, %s206
      %s228 = sphi 0, %s230
      %s231 = sphi 0, %s228
      %s232 = sphi 0, %s231
      %s248 = sphi 0, %s232
    $region4: #{tpu_custom_call.1} parent=1 // loop_header_branch
      %23 = sbr.rel (%p21) target = $region8
    $region5: #{tpu_custom_call.1} parent=1 // loop_body
      %s25 = ssub.s32 %s20, 1
      %s26 = ssub.s32 %s20, 2
      %s33 = sadd.s32 1, %s28
      %p34 = scmp.ge.s32.totalorder %s33, 1
      %s35 = scalar_select %p34, 0, %s33
      %s36 = sadd.s32 1, %s27
      %s37 = scalar_select %p34, %s36, %s27
      %p38 = scmp.ge.s32.totalorder %s37, 2
      %s39 = scalar_select %p38, 0, %s37
      %s40 = ssub.s32 %s28, %s35
      %p41 = scmp.eq.s32.totalorder %s40, 0
      %s43 = sadd.s32 %s42, 1
      %s44 = scalar_select %p41, %s42, %s43
      %p47 = pneg %p41
      %p48 = scmp.eq.s32.totalorder %s20, 1
      %p49 = por %p47, %p48
      %p50 = scmp.ne.s32.totalorder %s42, %s45
      %p51 = scmp.eq.s32.totalorder %s20, 0
      %p52 = por %p50, %p51
      %p53 = scmp.ne.s32.totalorder %s42, %s45
      %p54 = scmp.eq.s32.totalorder %s25, 1
      %p55 = por %p53, %p54
      %p56 = scmp.ne.s32.totalorder %s45, %s46
      %p57 = scmp.eq.s32.totalorder %s25, 0
      %p58 = por %p56, %p57
      %p59 = scmp.ne.s32.totalorder %s45, %s46
      %p60 = scmp.eq.s32.totalorder %s26, 1
      %p61 = por %p59, %p60
      %p63 = scmp.ne.s32.totalorder %s46, %s62
      %p64 = scmp.eq.s32.totalorder %s26, 0
      %p65 = por %p63, %p64
      %s66 = ssub.s32 %s28, %s35
      %s67 = ssub.s32 %s27, %s39
      %s68 = sor.u32 %s66, %s67
      %p69 = scmp.eq.s32.totalorder %s68, 0
      %s71 = sadd.s32 %s70, 1
      %s72 = scalar_select %p69, %s70, %s71
      %p75 = pneg %p69
      %p76 = scmp.eq.s32.totalorder %s20, 1
      %p77 = por %p75, %p76
      %p78 = scmp.ne.s32.totalorder %s70, %s73
      %p79 = scmp.eq.s32.totalorder %s20, 0
      %p80 = por %p78, %p79
      %p81 = scmp.ne.s32.totalorder %s70, %s73
      %p82 = scmp.eq.s32.totalorder %s25, 1
      %p83 = por %p81, %p82
      %p84 = scmp.ne.s32.totalorder %s73, %s74
      %p85 = scmp.eq.s32.totalorder %s25, 0
      %p86 = por %p84, %p85
      %p87 = scmp.ne.s32.totalorder %s73, %s74
      %p88 = scmp.eq.s32.totalorder %s26, 1
      %p89 = por %p87, %p88
      %p91 = scmp.ne.s32.totalorder %s74, %s90
      %p92 = scmp.eq.s32.totalorder %s26, 0
      %p93 = por %p91, %p92
      %s94 = ssub.s32 %s28, %s35
      %s95 = ssub.s32 %s27, %s39
      %s96 = sor.u32 %s94, %s95
      %p97 = scmp.eq.s32.totalorder %s96, 0
      %s99 = sadd.s32 %s98, 1
      %s100 = scalar_select %p97, %s98, %s99
      %p103 = pneg %p97
      %p104 = scmp.eq.s32.totalorder %s20, 1
      %p105 = por %p103, %p104
      %p106 = scmp.ne.s32.totalorder %s98, %s101
      %p107 = scmp.eq.s32.totalorder %s20, 0
      %p108 = por %p106, %p107
      %p109 = scmp.ne.s32.totalorder %s98, %s101
      %p110 = scmp.eq.s32.totalorder %s25, 1
      %p111 = por %p109, %p110
      %p112 = scmp.ne.s32.totalorder %s101, %s102
      %p113 = scmp.eq.s32.totalorder %s25, 0
      %p114 = por %p112, %p113
      %p115 = scmp.ne.s32.totalorder %s101, %s102
      %p116 = scmp.eq.s32.totalorder %s26, 1
      %p117 = por %p115, %p116
      %p119 = scmp.ne.s32.totalorder %s102, %s118
      %p120 = scmp.eq.s32.totalorder %s26, 0
      %p121 = por %p119, %p120
      %s122 = ssub.s32 %s28, %s35
      %p123 = scmp.eq.s32.totalorder %s122, 0
      %s125 = sadd.s32 %s124, 1
      %s126 = scalar_select %p123, %s124, %s125
      %p129 = pneg %p123
      %p130 = scmp.eq.s32.totalorder %s20, 1
      %p131 = por %p129, %p130
      %p132 = scmp.ne.s32.totalorder %s124, %s127
      %p133 = scmp.eq.s32.totalorder %s20, 0
      %p134 = por %p132, %p133
      %p135 = scmp.ne.s32.totalorder %s124, %s127
      %p136 = scmp.eq.s32.totalorder %s25, 1
      %p137 = por %p135, %p136
      %p138 = scmp.ne.s32.totalorder %s127, %s128
      %p139 = scmp.eq.s32.totalorder %s25, 0
      %p140 = por %p138, %p139
      %p141 = scmp.ne.s32.totalorder %s127, %s128
      %p142 = scmp.eq.s32.totalorder %s26, 1
      %p143 = por %p141, %p142
      %p145 = scmp.ne.s32.totalorder %s128, %s144
      %p146 = scmp.eq.s32.totalorder %s26, 0
      %p147 = por %p145, %p146
      %s148 = ssub.s32 %s27, %s39
      %p149 = scmp.eq.s32.totalorder %s148, 0
      %s151 = sadd.s32 %s150, 1
      %s152 = scalar_select %p149, %s150, %s151
      %p155 = pneg %p149
      %p156 = scmp.eq.s32.totalorder %s20, 1
      %p157 = por %p155, %p156
      %p158 = scmp.ne.s32.totalorder %s150, %s153
      %p159 = scmp.eq.s32.totalorder %s20, 0
      %p160 = por %p158, %p159
      %p161 = scmp.ne.s32.totalorder %s150, %s153
      %p162 = scmp.eq.s32.totalorder %s25, 1
      %p163 = por %p161, %p162
      %p164 = scmp.ne.s32.totalorder %s153, %s154
      %p165 = scmp.eq.s32.totalorder %s25, 0
      %p166 = por %p164, %p165
      %p167 = scmp.ne.s32.totalorder %s153, %s154
      %p168 = scmp.eq.s32.totalorder %s26, 1
      %p169 = por %p167, %p168
      %p171 = scmp.ne.s32.totalorder %s154, %s170
      %p172 = scmp.eq.s32.totalorder %s26, 0
      %p173 = por %p171, %p172
      %s174 = ssub.s32 %s27, %s39
      %p175 = scmp.eq.s32.totalorder %s174, 0
      %s177 = sadd.s32 %s176, 1
      %s178 = scalar_select %p175, %s176, %s177
      %p181 = pneg %p175
      %p182 = scmp.eq.s32.totalorder %s20, 1
      %p183 = por %p181, %p182
      %p184 = scmp.ne.s32.totalorder %s176, %s179
      %p185 = scmp.eq.s32.totalorder %s20, 0
      %p186 = por %p184, %p185
      %p187 = scmp.ne.s32.totalorder %s176, %s179
      %p188 = scmp.eq.s32.totalorder %s25, 1
      %p189 = por %p187, %p188
      %p190 = scmp.ne.s32.totalorder %s179, %s180
      %p191 = scmp.eq.s32.totalorder %s25, 0
      %p192 = por %p190, %p191
      %p193 = scmp.ne.s32.totalorder %s179, %s180
      %p194 = scmp.eq.s32.totalorder %s26, 1
      %p195 = por %p193, %p194
      %p197 = scmp.ne.s32.totalorder %s180, %s196
      %p198 = scmp.eq.s32.totalorder %s26, 0
      %p199 = por %p197, %p198
      %s200 = ssub.s32 %s27, %s39
      %p201 = scmp.eq.s32.totalorder %s200, 0
      %s203 = sadd.s32 %s202, 1
      %s204 = scalar_select %p201, %s202, %s203
      %p207 = pneg %p201
      %p208 = scmp.eq.s32.totalorder %s20, 1
      %p209 = por %p207, %p208
      %p210 = scmp.ne.s32.totalorder %s202, %s205
      %p211 = scmp.eq.s32.totalorder %s20, 0
      %p212 = por %p210, %p211
      %p213 = scmp.ne.s32.totalorder %s202, %s205
      %p214 = scmp.eq.s32.totalorder %s25, 1
      %p215 = por %p213, %p214
      %p216 = scmp.ne.s32.totalorder %s205, %s206
      %p217 = scmp.eq.s32.totalorder %s25, 0
      %p218 = por %p216, %p217
      %p219 = scmp.ne.s32.totalorder %s205, %s206
      %p220 = scmp.eq.s32.totalorder %s26, 1
      %p221 = por %p219, %p220
      %p223 = scmp.ne.s32.totalorder %s206, %s222
      %p224 = scmp.eq.s32.totalorder %s26, 0
      %p225 = por %p223, %p224
      %s226 = ssub.s32 %s27, %s39
      %p227 = scmp.eq.s32.totalorder %s226, 0
      %s229 = sadd.s32 %s228, 1
      %s230 = scalar_select %p227, %s228, %s229
      %p233 = pneg %p227
      %p234 = scmp.eq.s32.totalorder %s20, 1
      %p235 = por %p233, %p234
      %p236 = scmp.ne.s32.totalorder %s228, %s231
      %p237 = scmp.eq.s32.totalorder %s20, 0
      %p238 = por %p236, %p237
      %p239 = scmp.ne.s32.totalorder %s228, %s231
      %p240 = scmp.eq.s32.totalorder %s25, 1
      %p241 = por %p239, %p240
      %p242 = scmp.ne.s32.totalorder %s231, %s232
      %p243 = scmp.eq.s32.totalorder %s25, 0
      %p244 = por %p242, %p243
      %p245 = scmp.ne.s32.totalorder %s231, %s232
      %p246 = scmp.eq.s32.totalorder %s26, 1
      %p247 = por %p245, %p246
      %p249 = scmp.ne.s32.totalorder %s232, %s248
      %p250 = scmp.eq.s32.totalorder %s26, 0
      %p251 = por %p249, %p250
      %p252 = scmp.le.s32.totalorder 1, %s20
      %p253 = scmp.lt.s32.totalorder %s20, 3
      %p254 = pnand %p252, %p253
      %p255 = pneg %p254
      // Predicated region
      $region9: #{tpu_custom_call.1} parent=5 // pred_check
        _
      $region10: #{tpu_custom_call.1} parent=5 // pred_check_branch
        %257 = sbr.rel (%p254) target = $region12
      $region11: #{tpu_custom_call.1} parent=5 // pred_region
        %s258 = ssub.s32 %s20, 1
        // Predicated region
        $region13: #{tpu_custom_call.1} parent=11 // pred_check
          %p259 = pneg %p58
        $region14: #{tpu_custom_call.1} parent=11 // pred_check_branch
          %261 = sbr.rel (%p259) target = $region16
        $region15: #{tpu_custom_call.1} parent=11 // pred_region
          %s262 = smul.u32 4, %s30
          %s264 = ssub.s32 512, 512
          %265 = vsyncadd [#allocation3], %s264
          %s266 = smul.addr %s262, 128
          %s267 = scalar_lea.hbm %s0, %s266
          %s269 = sshll.u32 [#allocation2], 4
          %s270 = int_to_ptr.vmem [resolvable:$true] %s269
          %272 = dma.hbm_to_vmem [thread:$0]  %s267, 512, %s270, [#allocation3]
        $region16: #{tpu_custom_call.1} parent=11 // pred_fallthru
          _
        // Predicated region
        $region17: #{tpu_custom_call.1} parent=11 // pred_check
          %p273 = pneg %p140
        $region18: #{tpu_custom_call.1} parent=11 // pred_check_branch
          %275 = sbr.rel (%p273) target = $region20
        $region19: #{tpu_custom_call.1} parent=11 // pred_region
          %s276 = smul.u32 4, %s30
          %p277 = scmp.lt.s32.totalorder %s276, 3
          %s278 = scalar_select %p277, %s276, 3
          %s279 = scalar_lea.vmem %s3, %s278
          %s280 = smul.u32 4, %s30
        $region20: #{tpu_custom_call.1} parent=11 // pred_fallthru
          _
      $region12: #{tpu_custom_call.1} parent=5 // pred_fallthru
        _
      %p281 = scmp.lt.s32.totalorder %s20, 2
      // Predicated region
      $region21: #{tpu_custom_call.1} parent=5 // pred_check
        %p282 = pneg %p281
      $region22: #{tpu_custom_call.1} parent=5 // pred_check_branch
        %284 = sbr.rel (%p282) target = $region24
      $region23: #{tpu_custom_call.1} parent=5 // pred_region
        // Predicated region
        $region25: #{tpu_custom_call.1} parent=23 // pred_check
          %p285 = pneg %p80
        $region26: #{tpu_custom_call.1} parent=23 // pred_check_branch
          %287 = sbr.rel (%p285) target = $region28
        $region27: #{tpu_custom_call.1} parent=23 // pred_region
          %s288 = sand.u32 %s20, 1
          %s289 = scalar_lea.sflag [#allocation6], %s288
          %s290 = sand.u32 %s70, 1
          %s291 = smul.addr %s290, 512
          %s292 = scalar_lea.vmem [#allocation5], %s291
          %s293 = smul.u32 64, %s28
          %s295 = ssub.s32 8192, 8192
          %296 = vsyncadd %s289, %s295
          %s297 = smul.addr %s293, 2
          %s298 = sadd.s32 %s27, %s297
          %s299 = smul.addr %s298, 128
          %s300 = scalar_lea.hbm %s1, %s299
          %s301 = sshll.u32 %s292, 4
          %s302 = int_to_ptr.vmem [resolvable:$true] %s301
          %307 = dma.hbm_to_vmem [thread:$0]  %s300, 8192, %s302, %s289, 256, 128, 8
        $region28: #{tpu_custom_call.1} parent=23 // pred_fallthru
          _
        // Predicated region
        $region29: #{tpu_custom_call.1} parent=23 // pred_check
          %p308 = pneg %p108
        $region30: #{tpu_custom_call.1} parent=23 // pred_check_branch
          %310 = sbr.rel (%p308) target = $region32
        $region31: #{tpu_custom_call.1} parent=23 // pred_region
          %s311 = sand.u32 %s20, 1
          %s312 = scalar_lea.sflag [#allocation6], %s311
          %s313 = sand.u32 %s98, 1
          %s314 = smul.addr %s313, 512
          %s315 = scalar_lea.vmem [#allocation7], %s314
          %s316 = smul.u32 64, %s28
          %s318 = ssub.s32 8192, 8192
          %319 = vsyncadd %s312, %s318
          %s320 = smul.addr %s316, 2
          %s321 = sadd.s32 %s27, %s320
          %s322 = smul.addr %s321, 128
          %s323 = scalar_lea.hbm %s2, %s322
          %s324 = sshll.u32 %s315, 4
          %s325 = int_to_ptr.vmem [resolvable:$true] %s324
          %330 = dma.hbm_to_vmem [thread:$0]  %s323, 8192, %s325, %s312, 256, 128, 8
        $region32: #{tpu_custom_call.1} parent=23 // pred_fallthru
          _
        // Predicated region
        $region33: #{tpu_custom_call.1} parent=23 // pred_check
          %p331 = pneg %p160
        $region34: #{tpu_custom_call.1} parent=23 // pred_check_branch
          %333 = sbr.rel (%p331) target = $region36
        $region35: #{tpu_custom_call.1} parent=23 // pred_region
          %p334 = scmp.lt.s32.totalorder %s27, 1
          %s335 = scalar_select %p334, %s27, 1
          %s336 = scalar_lea.vmem %s4, %s335
        $region36: #{tpu_custom_call.1} parent=23 // pred_fallthru
          _
        // Predicated region
        $region37: #{tpu_custom_call.1} parent=23 // pred_check
          %p337 = pneg %p186
        $region38: #{tpu_custom_call.1} parent=23 // pred_check_branch
          %339 = sbr.rel (%p337) target = $region40
        $region39: #{tpu_custom_call.1} parent=23 // pred_region
          %p340 = scmp.lt.s32.totalorder %s27, 1
          %s341 = scalar_select %p340, %s27, 1
          %s342 = scalar_lea.vmem %s5, %s341
        $region40: #{tpu_custom_call.1} parent=23 // pred_fallthru
          _
        // Predicated region
        $region41: #{tpu_custom_call.1} parent=23 // pred_check
          %p343 = pneg %p212
        $region42: #{tpu_custom_call.1} parent=23 // pred_check_branch
          %345 = sbr.rel (%p343) target = $region44
        $region43: #{tpu_custom_call.1} parent=23 // pred_region
          %p346 = scmp.lt.s32.totalorder %s27, 1
          %s347 = scalar_select %p346, %s27, 1
          %s348 = scalar_lea.vmem %s6, %s347
        $region44: #{tpu_custom_call.1} parent=23 // pred_fallthru
          _
      $region24: #{tpu_custom_call.1} parent=5 // pred_fallthru
        _
      %p349 = scmp.le.s32.totalorder 1, %s20
      %p350 = scmp.lt.s32.totalorder %s20, 3
      %p351 = pnand %p349, %p350
      %p352 = pneg %p351
      // Predicated region
      $region45: #{tpu_custom_call.1} parent=5 // pred_check
        _
      $region46: #{tpu_custom_call.1} parent=5 // pred_check_branch
        %354 = sbr.rel (%p351) target = $region48
      $region47: #{tpu_custom_call.1} parent=5 // pred_region
        %s355 = ssub.s32 %s20, 1
        // Predicated region
        $region49: #{tpu_custom_call.1} parent=47 // pred_check
          %p356 = pneg %p58
        $region50: #{tpu_custom_call.1} parent=47 // pred_check_branch
          %358 = sbr.rel (%p356) target = $region52
        $region51: #{tpu_custom_call.1} parent=47 // pred_region
          %359 = dma.done [#allocation3], 512
        $region52: #{tpu_custom_call.1} parent=47 // pred_fallthru
          _
        %s360 = sand.u32 %s25, 1
        %s361 = scalar_lea.sflag [#allocation6], %s360
        %s362 = sand.u32 %s73, 1
        %s363 = smul.addr %s362, 512
        %s364 = scalar_lea.vmem [#allocation5], %s363
        // Predicated region
        $region53: #{tpu_custom_call.1} parent=47 // pred_check
          %p365 = pneg %p86
        $region54: #{tpu_custom_call.1} parent=47 // pred_check_branch
          %367 = sbr.rel (%p365) target = $region56
        $region55: #{tpu_custom_call.1} parent=47 // pred_region
          %368 = dma.done %s361, 8192
        $region56: #{tpu_custom_call.1} parent=47 // pred_fallthru
          _
        %s369 = sand.u32 %s25, 1
        %s370 = scalar_lea.sflag [#allocation6], %s369
        %s371 = sand.u32 %s101, 1
        %s372 = smul.addr %s371, 512
        %s373 = scalar_lea.vmem [#allocation7], %s372
        // Predicated region
        $region57: #{tpu_custom_call.1} parent=47 // pred_check
          %p374 = pneg %p114
        $region58: #{tpu_custom_call.1} parent=47 // pred_check_branch
          %376 = sbr.rel (%p374) target = $region60
        $region59: #{tpu_custom_call.1} parent=47 // pred_region
          %377 = dma.done %s370, 8192
        $region60: #{tpu_custom_call.1} parent=47 // pred_fallthru
          _
        %p378 = pneg %p58
        %p379 = pneg %p55
        %s380 = sand.u32 %s25, 1
        %s381 = scalar_lea.sflag [#allocation6], %s380
        %s382 = sand.u32 %s73, 1
        %s383 = smul.addr %s382, 512
        %s384 = scalar_lea.vmem [#allocation5], %s383
        %p385 = pneg %p86
        %p386 = pneg %p83
        %s387 = sand.u32 %s25, 1
        %s388 = scalar_lea.sflag [#allocation6], %s387
        %s389 = sand.u32 %s101, 1
        %s390 = smul.addr %s389, 512
        %s391 = scalar_lea.vmem [#allocation7], %s390
        %p392 = pneg %p114
        %p393 = pneg %p111
        %s394 = smul.u32 4, %s30
        %p395 = scmp.lt.s32.totalorder %s394, 3
        %s396 = scalar_select %p395, %s394, 3
        %s397 = scalar_lea.vmem %s3, %s396
        %p398 = pneg %p140
        %p399 = pneg %p137
        %p400 = scmp.lt.s32.totalorder %s29, 1
        %s401 = scalar_select %p400, %s29, 1
        %s402 = scalar_lea.vmem %s4, %s401
        %p403 = pneg %p166
        %p404 = pneg %p163
        %p405 = scmp.lt.s32.totalorder %s29, 1
        %s406 = scalar_select %p405, %s29, 1
        %s407 = scalar_lea.vmem %s5, %s406
        %p408 = pneg %p192
        %p409 = pneg %p189
        %p410 = scmp.lt.s32.totalorder %s29, 1
        %s411 = scalar_select %p410, %s29, 1
        %s412 = scalar_lea.vmem %s6, %s411
        %p413 = pneg %p218
        %p414 = pneg %p215
        %p415 = pneg %p244
        %p416 = pneg %p241
        %s417 = sand.u32 %s231, 1
        %s418 = scalar_lea.sflag [#allocation4], %s417
        %s419 = sand.u32 %s231, 1
        %s420 = smul.addr %s419, 8
        %s421 = scalar_lea.vmem [#allocation8], %s420
        %s422 = smul.u32 4, %s30
        %s423 = smul.u32 64, %s30
        %s424 = smul.u32 64, %s30
        %s425 = smul.u32 4, %s30
        %p426 = scmp.lt.s32.totalorder %s425, 3
        %s427 = scalar_select %p426, %s425, 3
        %s428 = scalar_lea.vmem %s3, %s427
        %s429 = smul.u32 4, %s30
        %p430 = scmp.lt.s32.totalorder %s29, 1
        %s431 = scalar_select %p430, %s29, 1
        %s432 = scalar_lea.vmem %s4, %s431
        %p433 = scmp.lt.s32.totalorder %s29, 1
        %s434 = scalar_select %p433, %s29, 1
        %s435 = scalar_lea.vmem %s5, %s434
        %p436 = scmp.lt.s32.totalorder %s29, 1
        %s437 = scalar_select %p436, %s29, 1
        %s438 = scalar_lea.vmem %s6, %s437
        %p439 = scmp.eq.s32.totalorder %s30, 0
        // Predicated region
        $region61: #{tpu_custom_call.1} parent=47 // pred_check
          %p440 = pneg %p439
        $region62: #{tpu_custom_call.1} parent=47 // pred_check_branch
          %442 = sbr.rel (%p440) target = $region64
        $region63: #{tpu_custom_call.1} parent=47 // pred_region
          %443 = vst [vmem:[%s421] sm:$0xff] 0.0
        $region64: #{tpu_custom_call.1} parent=47 // pred_fallthru
          _
        %v444 = vld [vmem:[#allocation2] sm:$0xff]
        %v445 = vld [vmem:[#allocation2 + $0x8] sm:$0xff]
        %v446 = vld [vmem:[#allocation2 + $0x10] sm:$0xff]
        %v447 = vld [vmem:[#allocation2 + $0x18] sm:$0xff]
        %v448 = vld [vmem:[%s364] sm:$0xff]
        %v449 = vld [vmem:[%s364 + $0x8] sm:$0xff]
        %v450 = vld [vmem:[%s364 + $0x10] sm:$0xff]
        %v451 = vld [vmem:[%s364 + $0x18] sm:$0xff]
        %v452 = vld [vmem:[%s364 + $0x20] sm:$0xff]
        %v453 = vld [vmem:[%s364 + $0x28] sm:$0xff]
        %v454 = vld [vmem:[%s364 + $0x30] sm:$0xff]
        %v455 = vld [vmem:[%s364 + $0x38] sm:$0xff]
        %v456 = vld [vmem:[%s364 + $0x40] sm:$0xff]
        %v457 = vld [vmem:[%s364 + $0x48] sm:$0xff]
        %v458 = vld [vmem:[%s364 + $0x50] sm:$0xff]
        %v459 = vld [vmem:[%s364 + $0x58] sm:$0xff]
        %v460 = vld [vmem:[%s364 + $0x60] sm:$0xff]
        %v461 = vld [vmem:[%s364 + $0x68] sm:$0xff]
        %v462 = vld [vmem:[%s364 + $0x70] sm:$0xff]
        %v463 = vld [vmem:[%s364 + $0x78] sm:$0xff]
        %v464 = vld [vmem:[%s364 + $0x80] sm:$0xff]
        %v465 = vld [vmem:[%s364 + $0x88] sm:$0xff]
        %v466 = vld [vmem:[%s364 + $0x90] sm:$0xff]
        %v467 = vld [vmem:[%s364 + $0x98] sm:$0xff]
        %v468 = vld [vmem:[%s364 + $0xa0] sm:$0xff]
        %v469 = vld [vmem:[%s364 + $0xa8] sm:$0xff]
        %v470 = vld [vmem:[%s364 + $0xb0] sm:$0xff]
        %v471 = vld [vmem:[%s364 + $0xb8] sm:$0xff]
        %v472 = vld [vmem:[%s364 + $0xc0] sm:$0xff]
        %v473 = vld [vmem:[%s364 + $0xc8] sm:$0xff]
        %v474 = vld [vmem:[%s364 + $0xd0] sm:$0xff]
        %v475 = vld [vmem:[%s364 + $0xd8] sm:$0xff]
        %v476 = vld [vmem:[%s364 + $0xe0] sm:$0xff]
        %v477 = vld [vmem:[%s364 + $0xe8] sm:$0xff]
        %v478 = vld [vmem:[%s364 + $0xf0] sm:$0xff]
        %v479 = vld [vmem:[%s364 + $0xf8] sm:$0xff]
        %v480 = vld [vmem:[%s364 + $0x100] sm:$0xff]
        %v481 = vld [vmem:[%s364 + $0x108] sm:$0xff]
        %v482 = vld [vmem:[%s364 + $0x110] sm:$0xff]
        %v483 = vld [vmem:[%s364 + $0x118] sm:$0xff]
        %v484 = vld [vmem:[%s364 + $0x120] sm:$0xff]
        %v485 = vld [vmem:[%s364 + $0x128] sm:$0xff]
        %v486 = vld [vmem:[%s364 + $0x130] sm:$0xff]
        %v487 = vld [vmem:[%s364 + $0x138] sm:$0xff]
        %v488 = vld [vmem:[%s364 + $0x140] sm:$0xff]
        %v489 = vld [vmem:[%s364 + $0x148] sm:$0xff]
        %v490 = vld [vmem:[%s364 + $0x150] sm:$0xff]
        %v491 = vld [vmem:[%s364 + $0x158] sm:$0xff]
        %v492 = vld [vmem:[%s364 + $0x160] sm:$0xff]
        %v493 = vld [vmem:[%s364 + $0x168] sm:$0xff]
        %v494 = vld [vmem:[%s364 + $0x170] sm:$0xff]
        %v495 = vld [vmem:[%s364 + $0x178] sm:$0xff]
        %v496 = vld [vmem:[%s364 + $0x180] sm:$0xff]
        %v497 = vld [vmem:[%s364 + $0x188] sm:$0xff]
        %v498 = vld [vmem:[%s364 + $0x190] sm:$0xff]
        %v499 = vld [vmem:[%s364 + $0x198] sm:$0xff]
        %v500 = vld [vmem:[%s364 + $0x1a0] sm:$0xff]
        %v501 = vld [vmem:[%s364 + $0x1a8] sm:$0xff]
        %v502 = vld [vmem:[%s364 + $0x1b0] sm:$0xff]
        %v503 = vld [vmem:[%s364 + $0x1b8] sm:$0xff]
        %v504 = vld [vmem:[%s364 + $0x1c0] sm:$0xff]
        %v505 = vld [vmem:[%s364 + $0x1c8] sm:$0xff]
        %v506 = vld [vmem:[%s364 + $0x1d0] sm:$0xff]
        %v507 = vld [vmem:[%s364 + $0x1d8] sm:$0xff]
        %v508 = vld [vmem:[%s364 + $0x1e0] sm:$0xff]
        %v509 = vld [vmem:[%s364 + $0x1e8] sm:$0xff]
        %v510 = vld [vmem:[%s364 + $0x1f0] sm:$0xff]
        %v511 = vld [vmem:[%s364 + $0x1f8] sm:$0xff]
        %v512 = vld [vmem:[%s428] sm:$0xf]
        %v514 = vlaneseq
        %v515 = vshrl.u32 %v514, 7
        %v516 = vsub.s32 0, %v515
        %v517 = vrot.slane %v512, %v516
        %v518 = vlaneseq
        %v519 = vshrl.u32 %v518, 7
        %v520 = vsub.s32 1, %v519
        %v521 = vrot.slane %v512, %v520
        %v522 = vlaneseq
        %v523 = vshrl.u32 %v522, 7
        %v524 = vsub.s32 2, %v523
        %v525 = vrot.slane %v512, %v524
        %v526 = vlaneseq
        %v527 = vshrl.u32 %v526, 7
        %v528 = vsub.s32 3, %v527
        %v529 = vrot.slane %v512, %v528
        %v534 = vmul.f32 %v444, %v517
        %v535 = vmul.f32 %v445, %v521
        %v536 = vmul.f32 %v446, %v525
        %v537 = vmul.f32 %v447, %v529
        %v538 = vld [vmem:[%s373] sm:$0xff]
        %v539 = vld [vmem:[%s373 + $0x8] sm:$0xff]
        %v540 = vld [vmem:[%s373 + $0x10] sm:$0xff]
        %v541 = vld [vmem:[%s373 + $0x18] sm:$0xff]
        %v542 = vld [vmem:[%s373 + $0x20] sm:$0xff]
        %v543 = vld [vmem:[%s373 + $0x28] sm:$0xff]
        %v544 = vld [vmem:[%s373 + $0x30] sm:$0xff]
        %v545 = vld [vmem:[%s373 + $0x38] sm:$0xff]
        %v546 = vld [vmem:[%s373 + $0x40] sm:$0xff]
        %v547 = vld [vmem:[%s373 + $0x48] sm:$0xff]
        %v548 = vld [vmem:[%s373 + $0x50] sm:$0xff]
        %v549 = vld [vmem:[%s373 + $0x58] sm:$0xff]
        %v550 = vld [vmem:[%s373 + $0x60] sm:$0xff]
        %v551 = vld [vmem:[%s373 + $0x68] sm:$0xff]
        %v552 = vld [vmem:[%s373 + $0x70] sm:$0xff]
        %v553 = vld [vmem:[%s373 + $0x78] sm:$0xff]
        %v554 = vld [vmem:[%s373 + $0x80] sm:$0xff]
        %v555 = vld [vmem:[%s373 + $0x88] sm:$0xff]
        %v556 = vld [vmem:[%s373 + $0x90] sm:$0xff]
        %v557 = vld [vmem:[%s373 + $0x98] sm:$0xff]
        %v558 = vld [vmem:[%s373 + $0xa0] sm:$0xff]
        %v559 = vld [vmem:[%s373 + $0xa8] sm:$0xff]
        %v560 = vld [vmem:[%s373 + $0xb0] sm:$0xff]
        %v561 = vld [vmem:[%s373 + $0xb8] sm:$0xff]
        %v562 = vld [vmem:[%s373 + $0xc0] sm:$0xff]
        %v563 = vld [vmem:[%s373 + $0xc8] sm:$0xff]
        %v564 = vld [vmem:[%s373 + $0xd0] sm:$0xff]
        %v565 = vld [vmem:[%s373 + $0xd8] sm:$0xff]
        %v566 = vld [vmem:[%s373 + $0xe0] sm:$0xff]
        %v567 = vld [vmem:[%s373 + $0xe8] sm:$0xff]
        %v568 = vld [vmem:[%s373 + $0xf0] sm:$0xff]
        %v569 = vld [vmem:[%s373 + $0xf8] sm:$0xff]
        %v570 = vld [vmem:[%s373 + $0x100] sm:$0xff]
        %v571 = vld [vmem:[%s373 + $0x108] sm:$0xff]
        %v572 = vld [vmem:[%s373 + $0x110] sm:$0xff]
        %v573 = vld [vmem:[%s373 + $0x118] sm:$0xff]
        %v574 = vld [vmem:[%s373 + $0x120] sm:$0xff]
        %v575 = vld [vmem:[%s373 + $0x128] sm:$0xff]
        %v576 = vld [vmem:[%s373 + $0x130] sm:$0xff]
        %v577 = vld [vmem:[%s373 + $0x138] sm:$0xff]
        %v578 = vld [vmem:[%s373 + $0x140] sm:$0xff]
        %v579 = vld [vmem:[%s373 + $0x148] sm:$0xff]
        %v580 = vld [vmem:[%s373 + $0x150] sm:$0xff]
        %v581 = vld [vmem:[%s373 + $0x158] sm:$0xff]
        %v582 = vld [vmem:[%s373 + $0x160] sm:$0xff]
        %v583 = vld [vmem:[%s373 + $0x168] sm:$0xff]
        %v584 = vld [vmem:[%s373 + $0x170] sm:$0xff]
        %v585 = vld [vmem:[%s373 + $0x178] sm:$0xff]
        %v586 = vld [vmem:[%s373 + $0x180] sm:$0xff]
        %v587 = vld [vmem:[%s373 + $0x188] sm:$0xff]
        %v588 = vld [vmem:[%s373 + $0x190] sm:$0xff]
        %v589 = vld [vmem:[%s373 + $0x198] sm:$0xff]
        %v590 = vld [vmem:[%s373 + $0x1a0] sm:$0xff]
        %v591 = vld [vmem:[%s373 + $0x1a8] sm:$0xff]
        %v592 = vld [vmem:[%s373 + $0x1b0] sm:$0xff]
        %v593 = vld [vmem:[%s373 + $0x1b8] sm:$0xff]
        %v594 = vld [vmem:[%s373 + $0x1c0] sm:$0xff]
        %v595 = vld [vmem:[%s373 + $0x1c8] sm:$0xff]
        %v596 = vld [vmem:[%s373 + $0x1d0] sm:$0xff]
        %v597 = vld [vmem:[%s373 + $0x1d8] sm:$0xff]
        %v598 = vld [vmem:[%s373 + $0x1e0] sm:$0xff]
        %v599 = vld [vmem:[%s373 + $0x1e8] sm:$0xff]
        %v600 = vld [vmem:[%s373 + $0x1f0] sm:$0xff]
        %v601 = vld [vmem:[%s373 + $0x1f8] sm:$0xff]
        %602 = vmatprep.subr.mxu0 0.0
        %603 = vmatpush1.msra.mxu0 %v538
        %604 = vmatprep.subr.mxu0 0.0
        %605 = vmatpush1.msra.mxu0 %v539
        %606 = vmatprep.subr.mxu0 0.0
        %607 = vmatpush1.msra.mxu0 %v540
        %608 = vmatprep.subr.mxu0 0.0
        %609 = vmatpush1.msra.mxu0 %v541
        %610 = vmatprep.subr.mxu0 0.0
        %611 = vmatpush1.msra.mxu0 %v542
        %612 = vmatprep.subr.mxu0 0.0
        %613 = vmatpush1.msra.mxu0 %v543
        %614 = vmatprep.subr.mxu0 0.0
        %615 = vmatpush1.msra.mxu0 %v544
        %616 = vmatprep.subr.mxu0 0.0
        %617 = vmatpush1.msra.mxu0 %v545
        %618 = vmatprep.subr.mxu0 0.0
        %619 = vmatpush1.msra.mxu0 %v546
        %620 = vmatprep.subr.mxu0 0.0
        %621 = vmatpush1.msra.mxu0 %v547
        %622 = vmatprep.subr.mxu0 0.0
        %623 = vmatpush1.msra.mxu0 %v548
        %624 = vmatprep.subr.mxu0 0.0
        %625 = vmatpush1.msra.mxu0 %v549
        %626 = vmatprep.subr.mxu0 0.0
        %627 = vmatpush1.msra.mxu0 %v550
        %628 = vmatprep.subr.mxu0 0.0
        %629 = vmatpush1.msra.mxu0 %v551
        %630 = vmatprep.subr.mxu0 0.0
        %631 = vmatpush1.msra.mxu0 %v552
        %632 = vmatprep.subr.mxu0 0.0
        %633 = vmatpush1.msra.mxu0 %v553
        %634 = vmatprep.subr.mxu0 0.0
        %635 = vmatpush1.msra.mxu0 %v554
        %636 = vmatprep.subr.mxu0 0.0
        %637 = vmatpush1.msra.mxu0 %v555
        %638 = vmatprep.subr.mxu0 0.0
        %639 = vmatpush1.msra.mxu0 %v556
        %640 = vmatprep.subr.mxu0 0.0
        %641 = vmatpush1.msra.mxu0 %v557
        %642 = vmatprep.subr.mxu0 0.0
        %643 = vmatpush1.msra.mxu0 %v558
        %644 = vmatprep.subr.mxu0 0.0
        %645 = vmatpush1.msra.mxu0 %v559
        %646 = vmatprep.subr.mxu0 0.0
        %647 = vmatpush1.msra.mxu0 %v560
        %648 = vmatprep.subr.mxu0 0.0
        %649 = vmatpush1.msra.mxu0 %v561
        %650 = vmatprep.subr.mxu0 0.0
        %651 = vmatpush1.msra.mxu0 %v562
        %652 = vmatprep.subr.mxu0 0.0
        %653 = vmatpush1.msra.mxu0 %v563
        %654 = vmatprep.subr.mxu0 0.0
        %655 = vmatpush1.msra.mxu0 %v564
        %656 = vmatprep.subr.mxu0 0.0
        %657 = vmatpush1.msra.mxu0 %v565
        %658 = vmatprep.subr.mxu0 0.0
        %659 = vmatpush1.msra.mxu0 %v566
        %660 = vmatprep.subr.mxu0 0.0
        %661 = vmatpush1.msra.mxu0 %v567
        %662 = vmatprep.subr.mxu0 0.0
        %663 = vmatpush1.msra.mxu0 %v568
        %664 = vmatprep.subr.mxu0 0.0
        %665 = vmatpush1.msra.mxu0 %v569
        %666 = vmatprep.mubr.f32.mxu0 %v535
        %667 = vmatmul.mubr.f32.gmra.mrb[0].mxu0 %v534
        %v668 = vpop.f32.mrb[0].mxu0
        %v669 = vadd.f32 0.0, %v668
        %v670 = vpop.f32.mrb[0].mxu0
        %671 = vdwg.mxu0
        %672 = vmatprep.subr.mxu0 0.0
        %673 = vmatpush1.msra.mxu0 %v570
        %674 = vmatprep.subr.mxu0 0.0
        %675 = vmatpush1.msra.mxu0 %v571
        %676 = vmatprep.subr.mxu0 0.0
        %677 = vmatpush1.msra.mxu0 %v572
        %678 = vmatprep.subr.mxu0 0.0
        %679 = vmatpush1.msra.mxu0 %v573
        %680 = vmatprep.subr.mxu0 0.0
        %681 = vmatpush1.msra.mxu0 %v574
        %682 = vmatprep.subr.mxu0 0.0
        %683 = vmatpush1.msra.mxu0 %v575
        %684 = vmatprep.subr.mxu0 0.0
        %685 = vmatpush1.msra.mxu0 %v576
        %686 = vmatprep.subr.mxu0 0.0
        %687 = vmatpush1.msra.mxu0 %v577
        %688 = vmatprep.subr.mxu0 0.0
        %689 = vmatpush1.msra.mxu0 %v578
        %690 = vmatprep.subr.mxu0 0.0
        %691 = vmatpush1.msra.mxu0 %v579
        %692 = vmatprep.subr.mxu0 0.0
        %693 = vmatpush1.msra.mxu0 %v580
        %694 = vmatprep.subr.mxu0 0.0
        %695 = vmatpush1.msra.mxu0 %v581
        %696 = vmatprep.subr.mxu0 0.0
        %697 = vmatpush1.msra.mxu0 %v582
        %698 = vmatprep.subr.mxu0 0.0
        %699 = vmatpush1.msra.mxu0 %v583
        %700 = vmatprep.subr.mxu0 0.0
        %701 = vmatpush1.msra.mxu0 %v584
        %702 = vmatprep.subr.mxu0 0.0
        %703 = vmatpush1.msra.mxu0 %v585
        %704 = vmatprep.subr.mxu0 0.0
        %705 = vmatpush1.msra.mxu0 %v586
        %706 = vmatprep.subr.mxu0 0.0
        %707 = vmatpush1.msra.mxu0 %v587
        %708 = vmatprep.subr.mxu0 0.0
        %709 = vmatpush1.msra.mxu0 %v588
        %710 = vmatprep.subr.mxu0 0.0
        %711 = vmatpush1.msra.mxu0 %v589
        %712 = vmatprep.subr.mxu0 0.0
        %713 = vmatpush1.msra.mxu0 %v590
        %714 = vmatprep.subr.mxu0 0.0
        %715 = vmatpush1.msra.mxu0 %v591
        %716 = vmatprep.subr.mxu0 0.0
        %717 = vmatpush1.msra.mxu0 %v592
        %718 = vmatprep.subr.mxu0 0.0
        %719 = vmatpush1.msra.mxu0 %v593
        %720 = vmatprep.subr.mxu0 0.0
        %721 = vmatpush1.msra.mxu0 %v594
        %722 = vmatprep.subr.mxu0 0.0
        %723 = vmatpush1.msra.mxu0 %v595
        %724 = vmatprep.subr.mxu0 0.0
        %725 = vmatpush1.msra.mxu0 %v596
        %726 = vmatprep.subr.mxu0 0.0
        %727 = vmatpush1.msra.mxu0 %v597
        %728 = vmatprep.subr.mxu0 0.0
        %729 = vmatpush1.msra.mxu0 %v598
        %730 = vmatprep.subr.mxu0 0.0
        %731 = vmatpush1.msra.mxu0 %v599
        %732 = vmatprep.subr.mxu0 0.0
        %733 = vmatpush1.msra.mxu0 %v600
        %734 = vmatprep.subr.mxu0 0.0
        %735 = vmatpush1.msra.mxu0 %v601
        %736 = vmatprep.mubr.f32.mxu0 %v537
        %737 = vmatmul.mubr.f32.gmra.mrb[0].mxu0 %v536
        %v738 = vpop.f32.mrb[0].mxu0
        %v739 = vadd.f32 %v669, %v738
        %v740 = vpop.f32.mrb[0].mxu0
        %741 = vdwg.mxu0
        %v742 = vld [vmem:[%s421] sm:$0xff]
        %v743 = vld [vmem:[%s432] sm:$0x1]
        %v745 = vlaneseq
        %v746 = vshrl.u32 %v745, 7
        %v747 = vsub.s32 0, %v746
        %v748 = vrot.slane %v743, %v747
        %v750 = vmul.f32 %v748, %v739
        %751 = vmatprep.subr.mxu0 0.0
        %752 = vmatpush1.msra.mxu0 %v448
        %753 = vmatprep.subr.mxu0 0.0
        %754 = vmatpush1.msra.mxu0 %v449
        %755 = vmatprep.subr.mxu0 0.0
        %756 = vmatpush1.msra.mxu0 %v450
        %757 = vmatprep.subr.mxu0 0.0
        %758 = vmatpush1.msra.mxu0 %v451
        %759 = vmatprep.subr.mxu0 0.0
        %760 = vmatpush1.msra.mxu0 %v452
        %761 = vmatprep.subr.mxu0 0.0
        %762 = vmatpush1.msra.mxu0 %v453
        %763 = vmatprep.subr.mxu0 0.0
        %764 = vmatpush1.msra.mxu0 %v454
        %765 = vmatprep.subr.mxu0 0.0
        %766 = vmatpush1.msra.mxu0 %v455
        %767 = vmatprep.subr.mxu0 0.0
        %768 = vmatpush1.msra.mxu0 %v456
        %769 = vmatprep.subr.mxu0 0.0
        %770 = vmatpush1.msra.mxu0 %v457
        %771 = vmatprep.subr.mxu0 0.0
        %772 = vmatpush1.msra.mxu0 %v458
        %773 = vmatprep.subr.mxu0 0.0
        %774 = vmatpush1.msra.mxu0 %v459
        %775 = vmatprep.subr.mxu0 0.0
        %776 = vmatpush1.msra.mxu0 %v460
        %777 = vmatprep.subr.mxu0 0.0
        %778 = vmatpush1.msra.mxu0 %v461
        %779 = vmatprep.subr.mxu0 0.0
        %780 = vmatpush1.msra.mxu0 %v462
        %781 = vmatprep.subr.mxu0 0.0
        %782 = vmatpush1.msra.mxu0 %v463
        %783 = vmatprep.subr.mxu0 0.0
        %784 = vmatpush1.msra.mxu0 %v464
        %785 = vmatprep.subr.mxu0 0.0
        %786 = vmatpush1.msra.mxu0 %v465
        %787 = vmatprep.subr.mxu0 0.0
        %788 = vmatpush1.msra.mxu0 %v466
        %789 = vmatprep.subr.mxu0 0.0
        %790 = vmatpush1.msra.mxu0 %v467
        %791 = vmatprep.subr.mxu0 0.0
        %792 = vmatpush1.msra.mxu0 %v468
        %793 = vmatprep.subr.mxu0 0.0
        %794 = vmatpush1.msra.mxu0 %v469
        %795 = vmatprep.subr.mxu0 0.0
        %796 = vmatpush1.msra.mxu0 %v470
        %797 = vmatprep.subr.mxu0 0.0
        %798 = vmatpush1.msra.mxu0 %v471
        %799 = vmatprep.subr.mxu0 0.0
        %800 = vmatpush1.msra.mxu0 %v472
        %801 = vmatprep.subr.mxu0 0.0
        %802 = vmatpush1.msra.mxu0 %v473
        %803 = vmatprep.subr.mxu0 0.0
        %804 = vmatpush1.msra.mxu0 %v474
        %805 = vmatprep.subr.mxu0 0.0
        %806 = vmatpush1.msra.mxu0 %v475
        %807 = vmatprep.subr.mxu0 0.0
        %808 = vmatpush1.msra.mxu0 %v476
        %809 = vmatprep.subr.mxu0 0.0
        %810 = vmatpush1.msra.mxu0 %v477
        %811 = vmatprep.subr.mxu0 0.0
        %812 = vmatpush1.msra.mxu0 %v478
        %813 = vmatprep.subr.mxu0 0.0
        %814 = vmatpush1.msra.mxu0 %v479
        %815 = vmatprep.mubr.f32.mxu0 %v445
        %816 = vmatmul.mubr.f32.gmra.mrb[0].mxu0 %v444
        %v817 = vpop.f32.mrb[0].mxu0
        %v818 = vadd.f32 %v750, %v817
        %v819 = vpop.f32.mrb[0].mxu0
        %820 = vdwg.mxu0
        %821 = vmatprep.subr.mxu0 0.0
        %822 = vmatpush1.msra.mxu0 %v480
        %823 = vmatprep.subr.mxu0 0.0
        %824 = vmatpush1.msra.mxu0 %v481
        %825 = vmatprep.subr.mxu0 0.0
        %826 = vmatpush1.msra.mxu0 %v482
        %827 = vmatprep.subr.mxu0 0.0
        %828 = vmatpush1.msra.mxu0 %v483
        %829 = vmatprep.subr.mxu0 0.0
        %830 = vmatpush1.msra.mxu0 %v484
        %831 = vmatprep.subr.mxu0 0.0
        %832 = vmatpush1.msra.mxu0 %v485
        %833 = vmatprep.subr.mxu0 0.0
        %834 = vmatpush1.msra.mxu0 %v486
        %835 = vmatprep.subr.mxu0 0.0
        %836 = vmatpush1.msra.mxu0 %v487
        %837 = vmatprep.subr.mxu0 0.0
        %838 = vmatpush1.msra.mxu0 %v488
        %839 = vmatprep.subr.mxu0 0.0
        %840 = vmatpush1.msra.mxu0 %v489
        %841 = vmatprep.subr.mxu0 0.0
        %842 = vmatpush1.msra.mxu0 %v490
        %843 = vmatprep.subr.mxu0 0.0
        %844 = vmatpush1.msra.mxu0 %v491
        %845 = vmatprep.subr.mxu0 0.0
        %846 = vmatpush1.msra.mxu0 %v492
        %847 = vmatprep.subr.mxu0 0.0
        %848 = vmatpush1.msra.mxu0 %v493
        %849 = vmatprep.subr.mxu0 0.0
        %850 = vmatpush1.msra.mxu0 %v494
        %851 = vmatprep.subr.mxu0 0.0
        %852 = vmatpush1.msra.mxu0 %v495
        %853 = vmatprep.subr.mxu0 0.0
        %854 = vmatpush1.msra.mxu0 %v496
        %855 = vmatprep.subr.mxu0 0.0
        %856 = vmatpush1.msra.mxu0 %v497
        %857 = vmatprep.subr.mxu0 0.0
        %858 = vmatpush1.msra.mxu0 %v498
        %859 = vmatprep.subr.mxu0 0.0
        %860 = vmatpush1.msra.mxu0 %v499
        %861 = vmatprep.subr.mxu0 0.0
        %862 = vmatpush1.msra.mxu0 %v500
        %863 = vmatprep.subr.mxu0 0.0
        %864 = vmatpush1.msra.mxu0 %v501
        %865 = vmatprep.subr.mxu0 0.0
        %866 = vmatpush1.msra.mxu0 %v502
        %867 = vmatprep.subr.mxu0 0.0
        %868 = vmatpush1.msra.mxu0 %v503
        %869 = vmatprep.subr.mxu0 0.0
        %870 = vmatpush1.msra.mxu0 %v504
        %871 = vmatprep.subr.mxu0 0.0
        %872 = vmatpush1.msra.mxu0 %v505
        %873 = vmatprep.subr.mxu0 0.0
        %874 = vmatpush1.msra.mxu0 %v506
        %875 = vmatprep.subr.mxu0 0.0
        %876 = vmatpush1.msra.mxu0 %v507
        %877 = vmatprep.subr.mxu0 0.0
        %878 = vmatpush1.msra.mxu0 %v508
        %879 = vmatprep.subr.mxu0 0.0
        %880 = vmatpush1.msra.mxu0 %v509
        %881 = vmatprep.subr.mxu0 0.0
        %882 = vmatpush1.msra.mxu0 %v510
        %883 = vmatprep.subr.mxu0 0.0
        %884 = vmatpush1.msra.mxu0 %v511
        %885 = vmatprep.mubr.f32.mxu0 %v447
        %886 = vmatmul.mubr.f32.gmra.mrb[0].mxu0 %v446
        %v887 = vpop.f32.mrb[0].mxu0
        %v888 = vadd.f32 %v818, %v887
        %v889 = vpop.f32.mrb[0].mxu0
        %890 = vdwg.mxu0
        %v891 = vadd.f32 %v742, %v888
        %892 = vst [vmem:[%s421] sm:$0xff] %v891
        // Predicated region
        $region65: #{tpu_custom_call.1} parent=47 // pred_check
          %p893 = pneg %p439
        $region66: #{tpu_custom_call.1} parent=47 // pred_check_branch
          %895 = sbr.rel (%p893) target = $region68
        $region67: #{tpu_custom_call.1} parent=47 // pred_region
          %v896 = vld [vmem:[%s421] sm:$0xff]
          %v897 = vld [vmem:[%s435] sm:$0x1]
          %v898 = vld [vmem:[%s438] sm:$0x1]
          %v899 = vld [vmem:[%s432] sm:$0x1]
          %v900 = vmul.f32 %v898, %v899
          %v901 = vadd.f32 %v897, %v900
          %v903 = vlaneseq
          %v904 = vshrl.u32 %v903, 7
          %v905 = vsub.s32 0, %v904
          %v906 = vrot.slane %v901, %v905
          %v908 = vadd.f32 %v896, %v906
          %909 = vst [vmem:[%s421] sm:$0xff] %v908
        $region68: #{tpu_custom_call.1} parent=47 // pred_fallthru
          _
        %s910 = sand.u32 %s231, 1
        %s911 = scalar_lea.sflag [#allocation4], %s910
        %s912 = sand.u32 %s231, 1
        %s913 = smul.addr %s912, 8
        %s914 = scalar_lea.vmem [#allocation8], %s913
        // Predicated region
        $region69: #{tpu_custom_call.1} parent=47 // pred_check
          %p915 = pneg %p241
        $region70: #{tpu_custom_call.1} parent=47 // pred_check_branch
          %917 = sbr.rel (%p915) target = $region72
        $region71: #{tpu_custom_call.1} parent=47 // pred_region
          %s919 = ssub.s32 128, 128
          %920 = vsyncadd %s911, %s919
          %s921 = smul.addr %s29, 128
          %s922 = scalar_lea.hbm %s7, %s921
          %s924 = sshll.u32 %s914, 4
          %s925 = int_to_ptr.vmem [resolvable:$true] %s924
          %927 = dma.vmem_to_hbm [thread:$0]  %s925, 128, %s922, %s911
        $region72: #{tpu_custom_call.1} parent=47 // pred_fallthru
          _
      $region48: #{tpu_custom_call.1} parent=5 // pred_fallthru
        _
      %p928 = scmp.le.s32.totalorder 2, %s20
      // Predicated region
      $region73: #{tpu_custom_call.1} parent=5 // pred_check
        %p929 = pneg %p928
      $region74: #{tpu_custom_call.1} parent=5 // pred_check_branch
        %931 = sbr.rel (%p929) target = $region76
      $region75: #{tpu_custom_call.1} parent=5 // pred_region
        %s932 = ssub.s32 %s20, 2
        // Predicated region
        $region77: #{tpu_custom_call.1} parent=75 // pred_check
          %p933 = pneg %p247
        $region78: #{tpu_custom_call.1} parent=75 // pred_check_branch
          %935 = sbr.rel (%p933) target = $region80
        $region79: #{tpu_custom_call.1} parent=75 // pred_region
          %s936 = sand.u32 %s232, 1
          %s937 = scalar_lea.sflag [#allocation4], %s936
          %s938 = sand.u32 %s232, 1
          %s939 = smul.addr %s938, 8
          %s940 = scalar_lea.vmem [#allocation8], %s939
          %941 = dma.done %s937, 128
        $region80: #{tpu_custom_call.1} parent=75 // pred_fallthru
          _
      $region76: #{tpu_custom_call.1} parent=5 // pred_fallthru
        _
    $region6: #{tpu_custom_call.1} parent=1 // loop_footer
      %s24 = sadd.s32 1, %s20
    $region7: #{tpu_custom_call.1} parent=1 // loop_footer_branch
      %19 = sbr.rel target = $region3
    $region8: #{tpu_custom_call.1} parent=1 // loop_exit
      _
    %942 = vsyncpa [#allocation3], 1
    %s943 = scalar_lea.sflag [#allocation3], 1
    %944 = vsyncpa %s943, 1
    %945 = vsyncpa [#allocation6], 1
    %s946 = scalar_lea.sflag [#allocation6], 1
    %947 = vsyncpa %s946, 1
    %948 = vsyncpa [#allocation4], 1
    %s949 = scalar_lea.sflag [#allocation4], 1
    %950 = vsyncpa %s949, 1

</llo_original>
